<compile_context>
chip_gen: v7x
topology: tpu7x:2x2x1
jax: 0.10.0
libtpu: 0.0.40
codegen_flags: <defaults>
</compile_context>

<pallas_src>
import functools

import jax
import jax.numpy as jnp
from jax.experimental import pallas as pl
from jax.experimental.pallas import tpu as pltpu


def _base_model_kernel(patches_ref, wconv_ref, bconv_ref, pool_ref,
                       wfc_ref, bfc_ref, out_ref):
    # patches_ref: (Kp, B*H*W)  bf16  im2col patches, transposed, K padded
    # wconv_ref:   (OC, Kp)     bf16  conv weight, transposed, K padded
    # bconv_ref:   (OC, 1)      f32   conv bias (column)
    # pool_ref:    (B, B*H*W)   f32   lane-dense per-batch avg-pool matrix
    # wfc_ref:     (NC, OC)     f32   classifier weight
    # bfc_ref:     (NC, 1)      f32   classifier bias (column)
    # out_ref:     (OC+NC, B)   f32   rows [0:OC]=features, [OC:OC+NC]=logits
    NC, OC = wfc_ref.shape

    # Single im2col conv matmul: (OC, Kp) @ (Kp, B*H*W) -> (OC, B*H*W) f32.
    acc = jnp.dot(wconv_ref[...], patches_ref[...],
                  preferred_element_type=jnp.float32)

    # Bias + ReLU on 128-lane-dense vregs (lane dim = B*H*W).
    act = jnp.maximum(acc + bconv_ref[...], 0.0)

    # Global average pool per batch element via MXU with a lane-dense pool
    # operand: contract lane dim of act (B*H*W) with lane dim of pool.
    feat_t = jax.lax.dot_general(
        act, pool_ref[...], (((1,), (1,)), ((), ())),
        preferred_element_type=jnp.float32)                    # (OC, B)

    # Classifier: (NC, OC) @ (OC, B) + bias.
    logits_t = (jnp.dot(wfc_ref[...], feat_t,
                        preferred_element_type=jnp.float32)
                + bfc_ref[...])                                # (NC, B)

    # Merged output: one writeback instead of two tiny ones.
    out_ref[0:OC, :] = feat_t
    out_ref[OC:OC + NC, :] = logits_t


@jax.jit
def _base_model_pallas(x_nchw, wconv_oihw, bconv, wfc, bfc):
    """Runs the synthetic base classifier. Returns (logits, features)."""
    x = x_nchw.astype(jnp.float32)
    B, C, H, W = x.shape
    OC, _, kH, kW = wconv_oihw.shape
    NC = wfc.shape[0]
    HW = H * W
    K = kH * kW * C                       # im2col contraction size (9*C)
    Kp = ((K + 127) // 128) * 128         # pad contraction to lane multiple

    # ---- layout plumbing in plain JAX (fused under jit) -------------------
    # NCHW -> NHWC, zero pad spatially (padding=1 for 3x3 'same' conv), cast
    # to bf16 BEFORE the 9x im2col expansion, then im2col and transpose so
    # B*H*W lands on the lane axis.
    x_nhwc = jnp.transpose(x, (0, 2, 3, 1))
    xpad = jnp.pad(x_nhwc, ((0, 0), (1, 1), (1, 1), (0, 0))).astype(
        jnp.bfloat16)
    taps = [xpad[:, dy:dy + H, dx:dx + W, :]
            for dy in range(kH) for dx in range(kW)]
    patches = jnp.stack(taps, axis=3).reshape(B * HW, K)       # (B*HW, 9C) bf16
    patches_t = jnp.pad(patches.T, ((0, Kp - K), (0, 0)))      # (Kp, B*HW)

    # Conv weight OIHW -> HWIO -> (9C, OC) -> transposed (OC, 9C) -> pad K.
    w_hwio = jnp.transpose(wconv_oihw, (2, 3, 1, 0)).reshape(K, OC)
    w_t = jnp.pad(w_hwio.T.astype(jnp.bfloat16), ((0, 0), (0, Kp - K)))
    bconv_col = bconv.reshape(OC, 1).astype(jnp.float32)

    # Lane-dense global-average-pool matrix: row b averages columns
    # b*HW .. (b+1)*HW-1 of the activation.  Input-independent -> folded.
    pool_t = (jnp.repeat(jnp.eye(B, dtype=jnp.float32), HW, axis=1)
              * jnp.float32(1.0 / HW))                         # (B, B*HW)

    wfc_f = wfc.astype(jnp.float32)                            # (NC, OC)
    bfc_col = bfc.reshape(NC, 1).astype(jnp.float32)

    flops = 2 * (OC * Kp * B * HW + OC * B * HW * B + NC * OC * B)
    bytes_accessed = (
        sum(int(a.size) * a.dtype.itemsize
            for a in (patches_t, w_t, bconv_col, pool_t, wfc_f, bfc_col))
        + 4 * (OC + NC) * B)

    # No grid: single invocation, whole operands resident in VMEM (a few
    # hundred KiB here), no double-buffering bookkeeping.  For much larger
    # B*H*W, reintroduce a "parallel" grid along the lane axis (>=2 blocks on
    # v7x for its dual TensorCores) with tile sizes sized against 64 MiB VMEM
    # (v7x) / 16 MiB default scoped VMEM (v5e).
    out = pl.pallas_call(
        _base_model_kernel,
        out_shape=jax.ShapeDtypeStruct((OC + NC, B), jnp.float32),
        in_specs=[pl.BlockSpec(memory_space=pltpu.MemorySpace.VMEM)] * 6,
        out_specs=pl.BlockSpec(memory_space=pltpu.MemorySpace.VMEM),
        cost_estimate=pl.CostEstimate(flops=int(flops),
                                      transcendentals=0,
                                      bytes_accessed=int(bytes_accessed)),
    )(patches_t, w_t, bconv_col, pool_t, wfc_f, bfc_col)

    # Tiny one-time slice + transposes back to (B, NC) / (B, OC), fused by jit.
    feats = out[0:OC, :].T
    logits = out[OC:OC + NC, :].T
    return logits, feats


class BaseImageClassifier:
    """Synthetic base classifier backing ContrastiveModel (image modality)."""

    def __init__(self, key, in_channels=4, hidden=32, num_classes=8):
        k1, k2, k3, k4 = jax.random.split(key, 4)
        # Deterministic synthetic parameters (PyTorch shapes: OIHW / (out,in))
        self.wconv = 0.1 * jax.random.normal(k1, (hidden, in_channels, 3, 3),
                                             jnp.float32)
        self.bconv = 0.1 * jax.random.normal(k2, (hidden,), jnp.float32)
        self.wfc = 0.1 * jax.random.normal(k3, (num_classes, hidden),
                                           jnp.float32)
        self.bfc = 0.1 * jax.random.normal(k4, (num_classes,), jnp.float32)

    def _forward(self, x_nchw):
        return _base_model_pallas(x_nchw, self.wconv, self.bconv,
                                  self.wfc, self.bfc)

    def get_features(self, x):
        _, feats = self._forward(x)
        return feats

    def __call__(self, x, return_features=False):
        logits, feats = self._forward(x)
        if return_features:
            return logits, feats
        return logits


class ContrastiveModel:
    """JAX/Pallas port of the PyTorch ContrastiveModel wrapper."""

    def __init__(self, base_model, modality='image'):
        self.base_model = base_model
        self.modality = modality

    def get_features(self, *args):
        if self.modality == 'multimodal':
            return self.base_model.get_features(args[0], args[1])
        return self.base_model.get_features(args[0])

    def __call__(self, *args, return_features=False):
        if self.modality == 'multimodal':
            if return_features:
                return self.base_model(args[0], args[1], return_features=True)
            return self.base_model(args[0], args[1])
        elif return_features:
            return self.base_model(args[0], return_features=True)
        return self.base_model(args[0])


def _reference_forward(x_nchw, wconv, bconv, wfc, bfc):
    """Pure-JAX reference for correctness checking."""
    x = jnp.transpose(x_nchw.astype(jnp.float32), (0, 2, 3, 1))
    w = jnp.transpose(wconv, (2, 3, 1, 0))  # HWIO
    y = jax.lax.conv_general_dilated(
        x, w, window_strides=(1, 1), padding='SAME',
        dimension_numbers=('NHWC', 'HWIO', 'NHWC'))
    y = jnp.maximum(y + bconv, 0.0)
    feat = jnp.mean(y, axis=(1, 2))
    logits = feat @ wfc.T + bfc
    return logits, feat


if __name__ == "__main__":
    key = jax.random.PRNGKey(0)
    k_params, k_x = jax.random.split(key)

    B, C, H, W = 2, 4, 16, 16            # small NCHW image batch
    x = jax.random.normal(k_x, (B, C, H, W), jnp.float32)

    base = BaseImageClassifier(k_params, in_channels=C, hidden=32,
                               num_classes=8)
    model = ContrastiveModel(base, modality='image')

    logits, feats = model(x, return_features=True)
    logits_only = model(x)
    feats_only = model.get_features(x)
    jax.block_until_ready((logits, feats, logits_only, feats_only))

    ref_logits, ref_feats = _reference_forward(
        x, base.wconv, base.bconv, base.wfc, base.bfc)
    # NOTE: conv input/weight run in bf16 on the MXU (f32 accumulation), so
    # results match an f32 reference to ~1e-3; pool/FC stay in f32.
    assert jnp.allclose(logits, ref_logits, atol=1e-2, rtol=1e-2)
    assert jnp.allclose(feats, ref_feats, atol=1e-2, rtol=1e-2)
    assert jnp.allclose(logits_only, ref_logits, atol=1e-2, rtol=1e-2)
    assert jnp.allclose(feats_only, ref_feats, atol=1e-2, rtol=1e-2)
    assert logits.shape == (B, 8) and feats.shape == (B, 32)

    print("KERNEL_OK")
</pallas_src>

<mosaic_0001>
module attributes {stable_mosaic.version = 11 : i64} {
  func.func @_base_model_kernel(%arg0: memref<128x512xbf16, #tpu.memory_space<vmem>>, %arg1: memref<32x128xbf16, #tpu.memory_space<vmem>>, %arg2: memref<32x1xf32, #tpu.memory_space<vmem>>, %arg3: memref<2x512xf32, #tpu.memory_space<vmem>>, %arg4: memref<8x32xf32, #tpu.memory_space<vmem>>, %arg5: memref<8x1xf32, #tpu.memory_space<vmem>>, %arg6: memref<40x2xf32, #tpu.memory_space<vmem>>) attributes {dimension_semantics = [], scalar_prefetch = 0 : i64, scratch_operands = 0 : i64, tpu.core_type = #tpu.core_type<tc>} {
    %c0 = arith.constant 0 : index
    %c0_0 = arith.constant 0 : index
    %0 = vector.load %arg1[%c0, %c0_0] : memref<32x128xbf16, #tpu.memory_space<vmem>>, vector<32x128xbf16>
    %c0_1 = arith.constant 0 : index
    %c0_2 = arith.constant 0 : index
    %1 = vector.load %arg0[%c0_1, %c0_2] : memref<128x512xbf16, #tpu.memory_space<vmem>>, vector<128x512xbf16>
    %cst = arith.constant dense<0.000000e+00> : vector<32x512xf32>
    %2 = tpu.matmul %0, %1, %cst {dimension_numbers = #tpu.dot_dimension_numbers<[1], [0], [0], [1], [0, 0, 1, 1], [], []>} : vector<32x128xbf16>, vector<128x512xbf16>, vector<32x512xf32> -> vector<32x512xf32>
    %c0_3 = arith.constant 0 : index
    %c0_4 = arith.constant 0 : index
    %3 = vector.load %arg2[%c0_3, %c0_4] : memref<32x1xf32, #tpu.memory_space<vmem>>, vector<32x1xf32>
    %4 = vector.broadcast %3 : vector<32x1xf32> to vector<32x512xf32>
    %5 = arith.addf %2, %4 : vector<32x512xf32>
    %cst_5 = arith.constant 0.000000e+00 : f32
    %6 = vector.broadcast %cst_5 : f32 to vector<32x512xf32>
    %7 = arith.maximumf %5, %6 : vector<32x512xf32>
    %c0_6 = arith.constant 0 : index
    %c0_7 = arith.constant 0 : index
    %8 = vector.load %arg3[%c0_6, %c0_7] : memref<2x512xf32, #tpu.memory_space<vmem>>, vector<2x512xf32>
    %cst_8 = arith.constant dense<0.000000e+00> : vector<32x2xf32>
    %9 = tpu.matmul %7, %8, %cst_8 {dimension_numbers = #tpu.dot_dimension_numbers<[1], [1], [0], [0], [0, 0, 1, 0], [], []>} : vector<32x512xf32>, vector<2x512xf32>, vector<32x2xf32> -> vector<32x2xf32>
    %c0_9 = arith.constant 0 : index
    %c0_10 = arith.constant 0 : index
    %10 = vector.load %arg4[%c0_9, %c0_10] : memref<8x32xf32, #tpu.memory_space<vmem>>, vector<8x32xf32>
    %cst_11 = arith.constant dense<0.000000e+00> : vector<8x2xf32>
    %11 = tpu.matmul %10, %9, %cst_11 {dimension_numbers = #tpu.dot_dimension_numbers<[1], [0], [0], [1], [0, 0, 1, 1], [], []>} : vector<8x32xf32>, vector<32x2xf32>, vector<8x2xf32> -> vector<8x2xf32>
    %c0_12 = arith.constant 0 : index
    %c0_13 = arith.constant 0 : index
    %12 = vector.load %arg5[%c0_12, %c0_13] : memref<8x1xf32, #tpu.memory_space<vmem>>, vector<8x1xf32>
    %13 = vector.broadcast %12 : vector<8x1xf32> to vector<8x2xf32>
    %14 = arith.addf %11, %13 : vector<8x2xf32>
    %c0_14 = arith.constant 0 : index
    %c0_15 = arith.constant 0 : index
    %15 = vector.load %arg6[%c0_14, %c0_15] : memref<40x2xf32, #tpu.memory_space<vmem>>, vector<32x2xf32>
    tpu.vector_store %arg6[%c0_14, %c0_15], %9 {strides = array<i32>} : memref<40x2xf32, #tpu.memory_space<vmem>>, vector<32x2xf32>,
    %c32 = arith.constant 32 : index
    %c0_16 = arith.constant 0 : index
    %16 = vector.load %arg6[%c32, %c0_16] : memref<40x2xf32, #tpu.memory_space<vmem>>, vector<8x2xf32>
    tpu.vector_store %arg6[%c32, %c0_16], %14 {strides = array<i32>} : memref<40x2xf32, #tpu.memory_space<vmem>>, vector<8x2xf32>,
    return
  }
}

</mosaic_0001>

<llo_original>
// kernel: _base_model_pallas.1
$region0: #{_base_model_pallas.1}
  #allocation0 [shape = 'u32[]', space=smem, size = 0x4, offset = 0x4, fixed_abs, tag = 'smem constant byte address 0x4 - core index']
  #allocation1 [shape = 'u32[144,128]{1,0:T(1,128)}', space=vmem, size = 0x12000, scoped, tag = 'internal scratch']
  %s0 = inlined_call_operand.vmem [shape: bf16[128,512], index: 0, kind: input, shape index: {}]
  %s1 = inlined_call_operand.vmem [shape: bf16[32,128], index: 1, kind: input, shape index: {}]
  %s2 = inlined_call_operand.vmem [shape: f32[32,1], index: 2, kind: input, shape index: {}]
  %s3 = inlined_call_operand.vmem [shape: f32[2,512], index: 3, kind: input, shape index: {}]
  %s4 = inlined_call_operand.vmem [shape: f32[8,32], index: 4, kind: input, shape index: {}]
  %s5 = inlined_call_operand.vmem [shape: f32[8,1], index: 5, kind: input, shape index: {}]
  %s6 = inlined_call_operand.vmem [shape: f32[40,2], index: 6, kind: output, shape index: {}]
  %s7 = sld [smem:[#allocation0]]
  $region34: #{_base_model_pallas.1} parent=0
    _
  %s9 = ssub.s32 1, %s7
  %s10 = scalar_select 0, %s9, %s7
  // Predicated region
  $region2: #{_base_model_pallas.1} parent=0 // pred_check
    _
  $region3: #{_base_model_pallas.1} parent=0 // pred_check_branch
    %12 = sbr.rel (0) target = $region5
  $region4: #{_base_model_pallas.1} parent=0 // pred_region
    _
  $region5: #{_base_model_pallas.1} parent=0 // pred_fallthru
    _
  // Predicated region
  $region6: #{_base_model_pallas.1} parent=0 // pred_check
    _
  $region7: #{_base_model_pallas.1} parent=0 // pred_check_branch
    %14 = sbr.rel (0) target = $region9
  $region8: #{_base_model_pallas.1} parent=0 // pred_region
    _
  $region9: #{_base_model_pallas.1} parent=0 // pred_fallthru
    _
  // Predicated region
  $region10: #{_base_model_pallas.1} parent=0 // pred_check
    _
  $region11: #{_base_model_pallas.1} parent=0 // pred_check_branch
    %16 = sbr.rel (0) target = $region13
  $region12: #{_base_model_pallas.1} parent=0 // pred_region
    _
  $region13: #{_base_model_pallas.1} parent=0 // pred_fallthru
    _
  // Predicated region
  $region14: #{_base_model_pallas.1} parent=0 // pred_check
    _
  $region15: #{_base_model_pallas.1} parent=0 // pred_check_branch
    %18 = sbr.rel (0) target = $region17
  $region16: #{_base_model_pallas.1} parent=0 // pred_region
    _
  $region17: #{_base_model_pallas.1} parent=0 // pred_fallthru
    _
  // Predicated region
  $region18: #{_base_model_pallas.1} parent=0 // pred_check
    _
  $region19: #{_base_model_pallas.1} parent=0 // pred_check_branch
    %20 = sbr.rel (0) target = $region21
  $region20: #{_base_model_pallas.1} parent=0 // pred_region
    _
  $region21: #{_base_model_pallas.1} parent=0 // pred_fallthru
    _
  // Predicated region
  $region22: #{_base_model_pallas.1} parent=0 // pred_check
    _
  $region23: #{_base_model_pallas.1} parent=0 // pred_check_branch
    %22 = sbr.rel (0) target = $region25
  $region24: #{_base_model_pallas.1} parent=0 // pred_region
    _
  $region25: #{_base_model_pallas.1} parent=0 // pred_fallthru
    _
  %v24 = vld [vmem:[%s1] sm:$0xf]
  %v25 = vld [vmem:[%s1 + $0x4] sm:$0xf]
  %v26 = vld [vmem:[%s1 + $0x8] sm:$0xf]
  %v27 = vld [vmem:[%s1 + $0xc] sm:$0xf]
  %v28 = vld [vmem:[%s0] sm:$0xff]
  %v29 = vld [vmem:[%s0 + $0x8] sm:$0xff]
  %v30 = vld [vmem:[%s0 + $0x10] sm:$0xff]
  %v31 = vld [vmem:[%s0 + $0x18] sm:$0xff]
  %v32 = vld [vmem:[%s0 + $0x20] sm:$0xff]
  %v33 = vld [vmem:[%s0 + $0x28] sm:$0xff]
  %v34 = vld [vmem:[%s0 + $0x30] sm:$0xff]
  %v35 = vld [vmem:[%s0 + $0x38] sm:$0xff]
  %v36 = vld [vmem:[%s0 + $0x40] sm:$0xff]
  %v37 = vld [vmem:[%s0 + $0x48] sm:$0xff]
  %v38 = vld [vmem:[%s0 + $0x50] sm:$0xff]
  %v39 = vld [vmem:[%s0 + $0x58] sm:$0xff]
  %v40 = vld [vmem:[%s0 + $0x60] sm:$0xff]
  %v41 = vld [vmem:[%s0 + $0x68] sm:$0xff]
  %v42 = vld [vmem:[%s0 + $0x70] sm:$0xff]
  %v43 = vld [vmem:[%s0 + $0x78] sm:$0xff]
  %v44 = vld [vmem:[%s0 + $0x80] sm:$0xff]
  %v45 = vld [vmem:[%s0 + $0x88] sm:$0xff]
  %v46 = vld [vmem:[%s0 + $0x90] sm:$0xff]
  %v47 = vld [vmem:[%s0 + $0x98] sm:$0xff]
  %v48 = vld [vmem:[%s0 + $0xa0] sm:$0xff]
  %v49 = vld [vmem:[%s0 + $0xa8] sm:$0xff]
  %v50 = vld [vmem:[%s0 + $0xb0] sm:$0xff]
  %v51 = vld [vmem:[%s0 + $0xb8] sm:$0xff]
  %v52 = vld [vmem:[%s0 + $0xc0] sm:$0xff]
  %v53 = vld [vmem:[%s0 + $0xc8] sm:$0xff]
  %v54 = vld [vmem:[%s0 + $0xd0] sm:$0xff]
  %v55 = vld [vmem:[%s0 + $0xd8] sm:$0xff]
  %v56 = vld [vmem:[%s0 + $0xe0] sm:$0xff]
  %v57 = vld [vmem:[%s0 + $0xe8] sm:$0xff]
  %v58 = vld [vmem:[%s0 + $0xf0] sm:$0xff]
  %v59 = vld [vmem:[%s0 + $0xf8] sm:$0xff]
  %v60 = vld [vmem:[%s2] sm:$0xff]
  %v61 = vld [vmem:[%s2 + $0x8] sm:$0xff]
  %v62 = vld [vmem:[%s2 + $0x10] sm:$0xff]
  %v63 = vld [vmem:[%s2 + $0x18] sm:$0xff]
  %65 = vset.pattern.permute.xlu0 0
  %66 = vperm.xlu0 %65, %v60
  %v67 = vpop.permute.xlu0 %66
  %70 = vset.pattern.permute.xlu0 0
  %71 = vperm.xlu0 %70, %v61
  %v72 = vpop.permute.xlu0 %71
  %75 = vset.pattern.permute.xlu0 0
  %76 = vperm.xlu0 %75, %v62
  %v77 = vpop.permute.xlu0 %76
  %80 = vset.pattern.permute.xlu0 0
  %81 = vperm.xlu0 %80, %v63
  %v82 = vpop.permute.xlu0 %81
  %v88 = vunpack.c.l.b16 %v24
  %v89 = vunpack.c.l.b16 %v25
  %v90 = vunpack.c.l.b16 %v26
  %v91 = vunpack.c.l.b16 %v27
  %v92 = vpack.c.b16 %v89, %v88
  %v93 = vpack.c.b16 %v91, %v90
  %v128 = vunpack.c.l.b16 %v28
  %v129 = vunpack.c.h.b16 %v28
  %v130 = vunpack.c.l.b16 %v29
  %v131 = vunpack.c.h.b16 %v29
  %v132 = vunpack.c.l.b16 %v30
  %v133 = vunpack.c.h.b16 %v30
  %v134 = vunpack.c.l.b16 %v31
  %v135 = vunpack.c.h.b16 %v31
  %v136 = vunpack.c.l.b16 %v32
  %v137 = vunpack.c.h.b16 %v32
  %v138 = vunpack.c.l.b16 %v33
  %v139 = vunpack.c.h.b16 %v33
  %v140 = vunpack.c.l.b16 %v34
  %v141 = vunpack.c.h.b16 %v34
  %v142 = vunpack.c.l.b16 %v35
  %v143 = vunpack.c.h.b16 %v35
  %v144 = vunpack.c.l.b16 %v36
  %v145 = vunpack.c.h.b16 %v36
  %v146 = vunpack.c.l.b16 %v37
  %v147 = vunpack.c.h.b16 %v37
  %v148 = vunpack.c.l.b16 %v38
  %v149 = vunpack.c.h.b16 %v38
  %v150 = vunpack.c.l.b16 %v39
  %v151 = vunpack.c.h.b16 %v39
  %v152 = vunpack.c.l.b16 %v40
  %v153 = vunpack.c.h.b16 %v40
  %v154 = vunpack.c.l.b16 %v41
  %v155 = vunpack.c.h.b16 %v41
  %v156 = vunpack.c.l.b16 %v42
  %v157 = vunpack.c.h.b16 %v42
  %v158 = vunpack.c.l.b16 %v43
  %v159 = vunpack.c.h.b16 %v43
  %v160 = vunpack.c.l.b16 %v44
  %v161 = vunpack.c.h.b16 %v44
  %v162 = vunpack.c.l.b16 %v45
  %v163 = vunpack.c.h.b16 %v45
  %v164 = vunpack.c.l.b16 %v46
  %v165 = vunpack.c.h.b16 %v46
  %v166 = vunpack.c.l.b16 %v47
  %v167 = vunpack.c.h.b16 %v47
  %v168 = vunpack.c.l.b16 %v48
  %v169 = vunpack.c.h.b16 %v48
  %v170 = vunpack.c.l.b16 %v49
  %v171 = vunpack.c.h.b16 %v49
  %v172 = vunpack.c.l.b16 %v50
  %v173 = vunpack.c.h.b16 %v50
  %v174 = vunpack.c.l.b16 %v51
  %v175 = vunpack.c.h.b16 %v51
  %v176 = vunpack.c.l.b16 %v52
  %v177 = vunpack.c.h.b16 %v52
  %v178 = vunpack.c.l.b16 %v53
  %v179 = vunpack.c.h.b16 %v53
  %v180 = vunpack.c.l.b16 %v54
  %v181 = vunpack.c.h.b16 %v54
  %v182 = vunpack.c.l.b16 %v55
  %v183 = vunpack.c.h.b16 %v55
  %v184 = vunpack.c.l.b16 %v56
  %v185 = vunpack.c.h.b16 %v56
  %v186 = vunpack.c.l.b16 %v57
  %v187 = vunpack.c.h.b16 %v57
  %v188 = vunpack.c.l.b16 %v58
  %v189 = vunpack.c.h.b16 %v58
  %v190 = vunpack.c.l.b16 %v59
  %v191 = vunpack.c.h.b16 %v59
  %v192 = vpack.c.b16 %v132, %v128
  %v193 = vpack.c.b16 %v133, %v129
  %v194 = vpack.c.b16 %v134, %v130
  %v195 = vpack.c.b16 %v135, %v131
  %v196 = vpack.c.b16 %v140, %v136
  %v197 = vpack.c.b16 %v141, %v137
  %v198 = vpack.c.b16 %v142, %v138
  %v199 = vpack.c.b16 %v143, %v139
  %v200 = vpack.c.b16 %v148, %v144
  %v201 = vpack.c.b16 %v149, %v145
  %v202 = vpack.c.b16 %v150, %v146
  %v203 = vpack.c.b16 %v151, %v147
  %v204 = vpack.c.b16 %v156, %v152
  %v205 = vpack.c.b16 %v157, %v153
  %v206 = vpack.c.b16 %v158, %v154
  %v207 = vpack.c.b16 %v159, %v155
  %v208 = vpack.c.b16 %v164, %v160
  %v209 = vpack.c.b16 %v165, %v161
  %v210 = vpack.c.b16 %v166, %v162
  %v211 = vpack.c.b16 %v167, %v163
  %v212 = vpack.c.b16 %v172, %v168
  %v213 = vpack.c.b16 %v173, %v169
  %v214 = vpack.c.b16 %v174, %v170
  %v215 = vpack.c.b16 %v175, %v171
  %v216 = vpack.c.b16 %v180, %v176
  %v217 = vpack.c.b16 %v181, %v177
  %v218 = vpack.c.b16 %v182, %v178
  %v219 = vpack.c.b16 %v183, %v179
  %v220 = vpack.c.b16 %v188, %v184
  %v221 = vpack.c.b16 %v189, %v185
  %v222 = vpack.c.b16 %v190, %v186
  %v223 = vpack.c.b16 %v191, %v187
  %256 = vmatprep.subr.bf16.mxu0 %v193
  %257 = vmatpush1.bf16.msra.mxu0 %v192
  %258 = vmatprep.subr.bf16.mxu0 %v197
  %259 = vmatpush1.bf16.msra.mxu0 %v196
  %260 = vmatprep.subr.bf16.mxu0 %v201
  %261 = vmatpush1.bf16.msra.mxu0 %v200
  %262 = vmatprep.subr.bf16.mxu0 %v205
  %263 = vmatpush1.bf16.msra.mxu0 %v204
  %264 = vmatprep.subr.bf16.mxu0 %v209
  %265 = vmatpush1.bf16.msra.mxu0 %v208
  %266 = vmatprep.subr.bf16.mxu0 %v213
  %267 = vmatpush1.bf16.msra.mxu0 %v212
  %268 = vmatprep.subr.bf16.mxu0 %v217
  %269 = vmatpush1.bf16.msra.mxu0 %v216
  %270 = vmatprep.subr.bf16.mxu0 %v221
  %271 = vmatpush1.bf16.msra.mxu0 %v220
  %272 = vmatprep.subr.bf16.mxu0 0
  %273 = vmatpush1.bf16.msra.mxu0 0
  %274 = vmatprep.subr.bf16.mxu0 0
  %275 = vmatpush1.bf16.msra.mxu0 0
  %276 = vmatprep.subr.bf16.mxu0 0
  %277 = vmatpush1.bf16.msra.mxu0 0
  %278 = vmatprep.subr.bf16.mxu0 0
  %279 = vmatpush1.bf16.msra.mxu0 0
  %280 = vmatprep.subr.bf16.mxu0 0
  %281 = vmatpush1.bf16.msra.mxu0 0
  %282 = vmatprep.subr.bf16.mxu0 0
  %283 = vmatpush1.bf16.msra.mxu0 0
  %284 = vmatprep.subr.bf16.mxu0 0
  %285 = vmatpush1.bf16.msra.mxu0 0
  %286 = vmatprep.subr.bf16.mxu0 0
  %287 = vmatpush1.bf16.msra.mxu0 0
  %288 = vmatprep.mubr.bf16.mxu0 0
  %289 = vmatmul.mubr.bf16.gmra.mrb[0].mxu0 %v92
  %v290 = vpop.f32.mrb[0].mxu0
  %v291 = vadd.f32 %v67, %v290
  %v292 = vpop.f32.mrb[0].mxu0
  %v293 = vadd.f32 %v67, %v292
  %v294 = vpop.f32.mrb[0].mxu0
  %v295 = vadd.f32 %v72, %v294
  %v296 = vpop.f32.mrb[0].mxu0
  %v297 = vadd.f32 %v72, %v296
  %298 = vmatprep.mubr.bf16.mxu0 0
  %299 = vmatmul.mubr.bf16.gmra.mrb[0].mxu0 %v93
  %v300 = vpop.f32.mrb[0].mxu0
  %v301 = vadd.f32 %v77, %v300
  %v302 = vpop.f32.mrb[0].mxu0
  %v303 = vadd.f32 %v77, %v302
  %v304 = vpop.f32.mrb[0].mxu0
  %v305 = vadd.f32 %v82, %v304
  %v306 = vpop.f32.mrb[0].mxu0
  %v307 = vadd.f32 %v82, %v306
  %308 = vdwg.mxu0
  %309 = vmatprep.subr.bf16.mxu0 %v195
  %310 = vmatpush1.bf16.msra.mxu0 %v194
  %311 = vmatprep.subr.bf16.mxu0 %v199
  %312 = vmatpush1.bf16.msra.mxu0 %v198
  %313 = vmatprep.subr.bf16.mxu0 %v203
  %314 = vmatpush1.bf16.msra.mxu0 %v202
  %315 = vmatprep.subr.bf16.mxu0 %v207
  %316 = vmatpush1.bf16.msra.mxu0 %v206
  %317 = vmatprep.subr.bf16.mxu0 %v211
  %318 = vmatpush1.bf16.msra.mxu0 %v210
  %319 = vmatprep.subr.bf16.mxu0 %v215
  %320 = vmatpush1.bf16.msra.mxu0 %v214
  %321 = vmatprep.subr.bf16.mxu0 %v219
  %322 = vmatpush1.bf16.msra.mxu0 %v218
  %323 = vmatprep.subr.bf16.mxu0 %v223
  %324 = vmatpush1.bf16.msra.mxu0 %v222
  %325 = vmatprep.subr.bf16.mxu0 0
  %326 = vmatpush1.bf16.msra.mxu0 0
  %327 = vmatprep.subr.bf16.mxu0 0
  %328 = vmatpush1.bf16.msra.mxu0 0
  %329 = vmatprep.subr.bf16.mxu0 0
  %330 = vmatpush1.bf16.msra.mxu0 0
  %331 = vmatprep.subr.bf16.mxu0 0
  %332 = vmatpush1.bf16.msra.mxu0 0
  %333 = vmatprep.subr.bf16.mxu0 0
  %334 = vmatpush1.bf16.msra.mxu0 0
  %335 = vmatprep.subr.bf16.mxu0 0
  %336 = vmatpush1.bf16.msra.mxu0 0
  %337 = vmatprep.subr.bf16.mxu0 0
  %338 = vmatpush1.bf16.msra.mxu0 0
  %339 = vmatprep.subr.bf16.mxu0 0
  %340 = vmatpush1.bf16.msra.mxu0 0
  %341 = vmatprep.mubr.bf16.mxu0 0
  %342 = vmatmul.mubr.bf16.gmra.mrb[0].mxu0 %v92
  %v343 = vpop.f32.mrb[0].mxu0
  %v344 = vadd.f32 %v67, %v343
  %v345 = vpop.f32.mrb[0].mxu0
  %v346 = vadd.f32 %v67, %v345
  %v347 = vpop.f32.mrb[0].mxu0
  %v348 = vadd.f32 %v72, %v347
  %v349 = vpop.f32.mrb[0].mxu0
  %v350 = vadd.f32 %v72, %v349
  %351 = vmatprep.mubr.bf16.mxu0 0
  %352 = vmatmul.mubr.bf16.gmra.mrb[0].mxu0 %v93
  %v353 = vpop.f32.mrb[0].mxu0
  %v354 = vadd.f32 %v77, %v353
  %v355 = vpop.f32.mrb[0].mxu0
  %v356 = vadd.f32 %v77, %v355
  %v357 = vpop.f32.mrb[0].mxu0
  %v358 = vadd.f32 %v82, %v357
  %v359 = vpop.f32.mrb[0].mxu0
  %v360 = vadd.f32 %v82, %v359
  %361 = vdwg.mxu0
  %v362 = vmax.f32 %v291, 0.0
  %v363 = vmax.f32 %v293, 0.0
  %v364 = vmax.f32 %v344, 0.0
  %v365 = vmax.f32 %v346, 0.0
  %v366 = vmax.f32 %v295, 0.0
  %v367 = vmax.f32 %v297, 0.0
  %v368 = vmax.f32 %v348, 0.0
  %v369 = vmax.f32 %v350, 0.0
  %v370 = vmax.f32 %v301, 0.0
  %v371 = vmax.f32 %v303, 0.0
  %v372 = vmax.f32 %v354, 0.0
  %v373 = vmax.f32 %v356, 0.0
  %v374 = vmax.f32 %v305, 0.0
  %v375 = vmax.f32 %v307, 0.0
  %v376 = vmax.f32 %v358, 0.0
  %v377 = vmax.f32 %v360, 0.0
  %v378 = vld [vmem:[%s3] sm:$0xff]
  %v380 = vcombine.high %v378, %v378
  %v382 = vunpack.c.l.s4 1983009808
  %v383 = vunpack.c.0.s8 %v382
  %v384 = vlaneseq
  %v385 = vshrl.u32 %v384, 7
  %v386 = vsub.s32 %v383, %v385
  %v387 = vrot.slane %v378, %v386
  %v389 = vunpack.c.l.s4 1983009808
  %v390 = vunpack.c.0.s8 %v389
  %v391 = vlaneseq
  %v392 = vshrl.u32 %v391, 7
  %v393 = vsub.s32 %v390, %v392
  %v394 = vrot.slane %v380, %v393
  %v395 = vcombine.high %v387, %v387
  %v396 = vcombine.high %v394, %v394
  %401 = vmatprep.subr.mxu0 %v395
  %402 = vmatpush1.xpose.msra.mxu0 %v387
  %403 = vmatprep.subr.mxu0 0.0
  %404 = vmatpush1.xpose.msra.mxu0 0.0
  %405 = vmatprep.subr.mxu0 0.0
  %406 = vmatpush1.xpose.msra.mxu0 0.0
  %407 = vmatprep.subr.mxu0 0.0
  %408 = vmatpush1.xpose.msra.mxu0 0.0
  %409 = vmatprep.subr.mxu0 0.0
  %410 = vmatpush1.xpose.msra.mxu0 0.0
  %411 = vmatprep.subr.mxu0 0.0
  %412 = vmatpush1.xpose.msra.mxu0 0.0
  %413 = vmatprep.subr.mxu0 0.0
  %414 = vmatpush1.xpose.msra.mxu0 0.0
  %415 = vmatprep.subr.mxu0 0.0
  %416 = vmatpush1.xpose.msra.mxu0 0.0
  %417 = vmatprep.subr.mxu0 0.0
  %418 = vmatpush1.xpose.msra.mxu0 0.0
  %419 = vmatprep.subr.mxu0 0.0
  %420 = vmatpush1.xpose.msra.mxu0 0.0
  %421 = vmatprep.subr.mxu0 0.0
  %422 = vmatpush1.xpose.msra.mxu0 0.0
  %423 = vmatprep.subr.mxu0 0.0
  %424 = vmatpush1.xpose.msra.mxu0 0.0
  %425 = vmatprep.subr.mxu0 0.0
  %426 = vmatpush1.xpose.msra.mxu0 0.0
  %427 = vmatprep.subr.mxu0 0.0
  %428 = vmatpush1.xpose.msra.mxu0 0.0
  %429 = vmatprep.subr.mxu0 0.0
  %430 = vmatpush1.xpose.msra.mxu0 0.0
  %431 = vmatprep.subr.mxu0 0.0
  %432 = vmatpush1.xpose.msra.mxu0 0.0
  %433 = vmatprep.subr.mxu0 0.0
  %434 = vmatpush1.xpose.msra.mxu0 0.0
  %435 = vmatprep.subr.mxu0 0.0
  %436 = vmatpush1.xpose.msra.mxu0 0.0
  %437 = vmatprep.subr.mxu0 0.0
  %438 = vmatpush1.xpose.msra.mxu0 0.0
  %439 = vmatprep.subr.mxu0 0.0
  %440 = vmatpush1.xpose.msra.mxu0 0.0
  %441 = vmatprep.subr.mxu0 0.0
  %442 = vmatpush1.xpose.msra.mxu0 0.0
  %443 = vmatprep.subr.mxu0 0.0
  %444 = vmatpush1.xpose.msra.mxu0 0.0
  %445 = vmatprep.subr.mxu0 0.0
  %446 = vmatpush1.xpose.msra.mxu0 0.0
  %447 = vmatprep.subr.mxu0 0.0
  %448 = vmatpush1.xpose.msra.mxu0 0.0
  %449 = vmatprep.subr.mxu0 0.0
  %450 = vmatpush1.xpose.msra.mxu0 0.0
  %451 = vmatprep.subr.mxu0 0.0
  %452 = vmatpush1.xpose.msra.mxu0 0.0
  %453 = vmatprep.subr.mxu0 0.0
  %454 = vmatpush1.xpose.msra.mxu0 0.0
  %455 = vmatprep.subr.mxu0 0.0
  %456 = vmatpush1.xpose.msra.mxu0 0.0
  %457 = vmatprep.subr.mxu0 0.0
  %458 = vmatpush1.xpose.msra.mxu0 0.0
  %459 = vmatprep.subr.mxu0 0.0
  %460 = vmatpush1.xpose.msra.mxu0 0.0
  %461 = vmatprep.subr.mxu0 0.0
  %462 = vmatpush1.xpose.msra.mxu0 0.0
  %463 = vmatprep.subr.mxu0 0.0
  %464 = vmatpush1.xpose.msra.mxu0 0.0
  %465 = vmatprep.mubr.f32.mxu0 %v363
  %466 = vmatmul.mubr.f32.gmra.mrb[0].mxu0 %v362
  %v467 = vpop.f32.mrb[0].mxu0
  %v468 = vadd.f32 0.0, %v467
  %v469 = vpop.f32.mrb[0].mxu0
  %470 = vmatprep.mubr.f32.mxu0 %v367
  %471 = vmatmul.mubr.f32.gmra.mrb[0].mxu0 %v366
  %v472 = vpop.f32.mrb[0].mxu0
  %v473 = vadd.f32 0.0, %v472
  %v474 = vpop.f32.mrb[0].mxu0
  %475 = vmatprep.mubr.f32.mxu0 %v371
  %476 = vmatmul.mubr.f32.gmra.mrb[0].mxu0 %v370
  %v477 = vpop.f32.mrb[0].mxu0
  %v478 = vadd.f32 0.0, %v477
  %v479 = vpop.f32.mrb[0].mxu0
  %480 = vmatprep.mubr.f32.mxu0 %v375
  %481 = vmatmul.mubr.f32.gmra.mrb[0].mxu0 %v374
  %v482 = vpop.f32.mrb[0].mxu0
  %v483 = vadd.f32 0.0, %v482
  %v484 = vpop.f32.mrb[0].mxu0
  %485 = vdwg.mxu0
  %486 = vmatprep.subr.mxu0 %v396
  %487 = vmatpush1.xpose.msra.mxu0 %v394
  %488 = vmatprep.subr.mxu0 0.0
  %489 = vmatpush1.xpose.msra.mxu0 0.0
  %490 = vmatprep.subr.mxu0 0.0
  %491 = vmatpush1.xpose.msra.mxu0 0.0
  %492 = vmatprep.subr.mxu0 0.0
  %493 = vmatpush1.xpose.msra.mxu0 0.0
  %494 = vmatprep.subr.mxu0 0.0
  %495 = vmatpush1.xpose.msra.mxu0 0.0
  %496 = vmatprep.subr.mxu0 0.0
  %497 = vmatpush1.xpose.msra.mxu0 0.0
  %498 = vmatprep.subr.mxu0 0.0
  %499 = vmatpush1.xpose.msra.mxu0 0.0
  %500 = vmatprep.subr.mxu0 0.0
  %501 = vmatpush1.xpose.msra.mxu0 0.0
  %502 = vmatprep.subr.mxu0 0.0
  %503 = vmatpush1.xpose.msra.mxu0 0.0
  %504 = vmatprep.subr.mxu0 0.0
  %505 = vmatpush1.xpose.msra.mxu0 0.0
  %506 = vmatprep.subr.mxu0 0.0
  %507 = vmatpush1.xpose.msra.mxu0 0.0
  %508 = vmatprep.subr.mxu0 0.0
  %509 = vmatpush1.xpose.msra.mxu0 0.0
  %510 = vmatprep.subr.mxu0 0.0
  %511 = vmatpush1.xpose.msra.mxu0 0.0
  %512 = vmatprep.subr.mxu0 0.0
  %513 = vmatpush1.xpose.msra.mxu0 0.0
  %514 = vmatprep.subr.mxu0 0.0
  %515 = vmatpush1.xpose.msra.mxu0 0.0
  %516 = vmatprep.subr.mxu0 0.0
  %517 = vmatpush1.xpose.msra.mxu0 0.0
  %518 = vmatprep.subr.mxu0 0.0
  %519 = vmatpush1.xpose.msra.mxu0 0.0
  %520 = vmatprep.subr.mxu0 0.0
  %521 = vmatpush1.xpose.msra.mxu0 0.0
  %522 = vmatprep.subr.mxu0 0.0
  %523 = vmatpush1.xpose.msra.mxu0 0.0
  %524 = vmatprep.subr.mxu0 0.0
  %525 = vmatpush1.xpose.msra.mxu0 0.0
  %526 = vmatprep.subr.mxu0 0.0
  %527 = vmatpush1.xpose.msra.mxu0 0.0
  %528 = vmatprep.subr.mxu0 0.0
  %529 = vmatpush1.xpose.msra.mxu0 0.0
  %530 = vmatprep.subr.mxu0 0.0
  %531 = vmatpush1.xpose.msra.mxu0 0.0
  %532 = vmatprep.subr.mxu0 0.0
  %533 = vmatpush1.xpose.msra.mxu0 0.0
  %534 = vmatprep.subr.mxu0 0.0
  %535 = vmatpush1.xpose.msra.mxu0 0.0
  %536 = vmatprep.subr.mxu0 0.0
  %537 = vmatpush1.xpose.msra.mxu0 0.0
  %538 = vmatprep.subr.mxu0 0.0
  %539 = vmatpush1.xpose.msra.mxu0 0.0
  %540 = vmatprep.subr.mxu0 0.0
  %541 = vmatpush1.xpose.msra.mxu0 0.0
  %542 = vmatprep.subr.mxu0 0.0
  %543 = vmatpush1.xpose.msra.mxu0 0.0
  %544 = vmatprep.subr.mxu0 0.0
  %545 = vmatpush1.xpose.msra.mxu0 0.0
  %546 = vmatprep.subr.mxu0 0.0
  %547 = vmatpush1.xpose.msra.mxu0 0.0
  %548 = vmatprep.subr.mxu0 0.0
  %549 = vmatpush1.xpose.msra.mxu0 0.0
  %550 = vmatprep.mubr.f32.mxu0 %v365
  %551 = vmatmul.mubr.f32.gmra.mrb[0].mxu0 %v364
  %v552 = vpop.f32.mrb[0].mxu0
  %v553 = vadd.f32 %v468, %v552
  %v554 = vpop.f32.mrb[0].mxu0
  %555 = vmatprep.mubr.f32.mxu0 %v369
  %556 = vmatmul.mubr.f32.gmra.mrb[0].mxu0 %v368
  %v557 = vpop.f32.mrb[0].mxu0
  %v558 = vadd.f32 %v473, %v557
  %v559 = vpop.f32.mrb[0].mxu0
  %560 = vmatprep.mubr.f32.mxu0 %v373
  %561 = vmatmul.mubr.f32.gmra.mrb[0].mxu0 %v372
  %v562 = vpop.f32.mrb[0].mxu0
  %v563 = vadd.f32 %v478, %v562
  %v564 = vpop.f32.mrb[0].mxu0
  %565 = vmatprep.mubr.f32.mxu0 %v377
  %566 = vmatmul.mubr.f32.gmra.mrb[0].mxu0 %v376
  %v567 = vpop.f32.mrb[0].mxu0
  %v568 = vadd.f32 %v483, %v567
  %v569 = vpop.f32.mrb[0].mxu0
  %570 = vdwg.mxu0
  %v571 = vld [vmem:[%s4] sm:$0xff]
  %v572 = vld [vmem:[%s5] sm:$0xff]
  %574 = vset.pattern.permute.xlu0 0
  %575 = vperm.xlu0 %574, %v572
  %v576 = vpop.permute.xlu0 %575
  %vm578 = vcmask 261120
  %v580 = vsel %vm578, %v571, 0
  %582 = vmatprep.subr.mxu0 0.0
  %583 = vmatpush1.msra.mxu0 %v553
  %584 = vmatprep.subr.mxu0 0.0
  %585 = vmatpush1.msra.mxu0 %v558
  %586 = vmatprep.subr.mxu0 0.0
  %587 = vmatpush1.msra.mxu0 %v563
  %588 = vmatprep.subr.mxu0 0.0
  %589 = vmatpush1.msra.mxu0 %v568
  %590 = vmatprep.subr.mxu0 0.0
  %591 = vmatpush1.msra.mxu0 0.0
  %592 = vmatprep.subr.mxu0 0.0
  %593 = vmatpush1.msra.mxu0 0.0
  %594 = vmatprep.subr.mxu0 0.0
  %595 = vmatpush1.msra.mxu0 0.0
  %596 = vmatprep.subr.mxu0 0.0
  %597 = vmatpush1.msra.mxu0 0.0
  %598 = vmatprep.subr.mxu0 0.0
  %599 = vmatpush1.msra.mxu0 0.0
  %600 = vmatprep.subr.mxu0 0.0
  %601 = vmatpush1.msra.mxu0 0.0
  %602 = vmatprep.subr.mxu0 0.0
  %603 = vmatpush1.msra.mxu0 0.0
  %604 = vmatprep.subr.mxu0 0.0
  %605 = vmatpush1.msra.mxu0 0.0
  %606 = vmatprep.subr.mxu0 0.0
  %607 = vmatpush1.msra.mxu0 0.0
  %608 = vmatprep.subr.mxu0 0.0
  %609 = vmatpush1.msra.mxu0 0.0
  %610 = vmatprep.subr.mxu0 0.0
  %611 = vmatpush1.msra.mxu0 0.0
  %612 = vmatprep.subr.mxu0 0.0
  %613 = vmatpush1.msra.mxu0 0.0
  %614 = vmatprep.subr.mxu0 0.0
  %615 = vmatpush1.msra.mxu0 0.0
  %616 = vmatprep.subr.mxu0 0.0
  %617 = vmatpush1.msra.mxu0 0.0
  %618 = vmatprep.subr.mxu0 0.0
  %619 = vmatpush1.msra.mxu0 0.0
  %620 = vmatprep.subr.mxu0 0.0
  %621 = vmatpush1.msra.mxu0 0.0
  %622 = vmatprep.subr.mxu0 0.0
  %623 = vmatpush1.msra.mxu0 0.0
  %624 = vmatprep.subr.mxu0 0.0
  %625 = vmatpush1.msra.mxu0 0.0
  %626 = vmatprep.subr.mxu0 0.0
  %627 = vmatpush1.msra.mxu0 0.0
  %628 = vmatprep.subr.mxu0 0.0
  %629 = vmatpush1.msra.mxu0 0.0
  %630 = vmatprep.subr.mxu0 0.0
  %631 = vmatpush1.msra.mxu0 0.0
  %632 = vmatprep.subr.mxu0 0.0
  %633 = vmatpush1.msra.mxu0 0.0
  %634 = vmatprep.subr.mxu0 0.0
  %635 = vmatpush1.msra.mxu0 0.0
  %636 = vmatprep.subr.mxu0 0.0
  %637 = vmatpush1.msra.mxu0 0.0
  %638 = vmatprep.subr.mxu0 0.0
  %639 = vmatpush1.msra.mxu0 0.0
  %640 = vmatprep.subr.mxu0 0.0
  %641 = vmatpush1.msra.mxu0 0.0
  %642 = vmatprep.subr.mxu0 0.0
  %643 = vmatpush1.msra.mxu0 0.0
  %644 = vmatprep.subr.mxu0 0.0
  %645 = vmatpush1.msra.mxu0 0.0
  %646 = vmatprep.mubr.f32.mxu0 0.0
  %647 = vmatmul.mubr.f32.gmra.mrb[0].mxu0 %v580
  %v648 = vpop.f32.mrb[0].mxu0
  %v649 = vadd.f32 %v576, %v648
  %v650 = vpop.f32.mrb[0].mxu0
  %651 = vdwg.mxu0
  %vm652 = vcmask 15360
  %653 = vst.msk [vmem:[%s6] sm:$0xff] %vm652, %v553
  %654 = vst.msk [vmem:[%s6 + $0x8] sm:$0xff] %vm652, %v558
  %655 = vst.msk [vmem:[%s6 + $0x10] sm:$0xff] %vm652, %v563
  %656 = vst.msk [vmem:[%s6 + $0x18] sm:$0xff] %vm652, %v568
  %657 = vst.msk [vmem:[%s6 + $0x20] sm:$0xff] %vm652, %v649
  // Predicated region
  $region26: #{_base_model_pallas.1} parent=0 // pred_check
    _
  $region27: #{_base_model_pallas.1} parent=0 // pred_check_branch
    %659 = sbr.rel (0) target = $region29
  $region28: #{_base_model_pallas.1} parent=0 // pred_region
    _
  $region29: #{_base_model_pallas.1} parent=0 // pred_fallthru
    _
  // Predicated region
  $region30: #{_base_model_pallas.1} parent=0 // pred_check
    _
  $region31: #{_base_model_pallas.1} parent=0 // pred_check_branch
    %661 = sbr.rel (0) target = $region33
  $region32: #{_base_model_pallas.1} parent=0 // pred_region
    _
  $region33: #{_base_model_pallas.1} parent=0 // pred_fallthru
    _

</llo_original>
